<compile_context>
chip_gen: v7x
topology: tpu7x:2x2x1
jax: 0.10.0
libtpu: 0.0.40
codegen_flags: <defaults>
</compile_context>

<pallas_src>
import functools

import jax
import jax.numpy as jnp
from jax.experimental import pallas as pl
from jax.experimental.pallas import tpu as pltpu

KH = KW = 4
STRIDE = 2
PAD = 1
EPS = 1e-5
NEG_SLOPE = 0.2
_LANE = 128


def _round_up(x, m):
    return (x + m - 1) // m * m


def _vmem_limit_bytes():
    """Generation-aware VMEM request: ~78% of physical, capped at 100 MiB."""
    cap = 64 * 1024 * 1024
    try:
        info = pltpu.get_tpu_info()
        cap = int(getattr(info, "vmem_capacity_bytes", cap)) or cap
    except Exception:
        pass
    return min(int(0.78 * cap), 100 * 1024 * 1024)


def _pick_c_tile(c_out, n_batch):
    c_tile = c_out
    for c in (256, 128, 64, 32, 16, 8):
        if c <= c_out and c_out % c == 0:
            c_tile = c
            break
    # v7x megacore: with a single batch element make sure there are >= 2
    # parallel channel tiles so both TensorCores get work (keep the sublane
    # dim a multiple of 8).
    if n_batch == 1 and c_out // c_tile < 2:
        half = c_tile // 2
        if half >= 8 and half % 8 == 0 and c_out % half == 0:
            c_tile = half
    return c_tile


def _pick_hw_tile(hw_pad, k, c_tile, out_bytes, vmem_limit):
    """Largest hw tile whose double-buffered working set fits the budget."""
    budget = int(0.6 * vmem_limit)

    def footprint(t):
        patch = 2 * k * t * 2                    # bf16 patch tile, x2 buffers
        wgt = 2 * c_tile * k * 2                 # bf16 weight tile, x2 buffers
        out = 2 * c_tile * hw_pad * out_bytes    # resident output block, x2
        return patch + wgt + out

    if footprint(hw_pad) <= budget:
        return hw_pad                            # single-tile fused-norm path
    for t in (2048, 1024, 512, 256, 128):
        if t <= hw_pad and hw_pad % t == 0 and footprint(t) <= budget:
            return t
    return _LANE if hw_pad % _LANE == 0 else hw_pad


# TODO(synk): fuse im2col into the kernel (keep x in HBM via
# memory_space=pl.ANY, manual DMA of padded input row-bands + in-VMEM window
# extraction) so the patch slab is never materialized in HBM — remaining
# bandwidth win, biggest on v5e.
def _im2col(x, dtype):
    """x: (N, C_in, H, W) -> patches (N, C_in*KH*KW, H_out*W_out) in `dtype`."""
    n, c_in, h, w = x.shape
    h_out = (h + 2 * PAD - KH) // STRIDE + 1
    w_out = (w + 2 * PAD - KW) // STRIDE + 1
    x_pad = jnp.pad(x, ((0, 0), (0, 0), (PAD, PAD), (PAD, PAD)))
    rows = []
    for kh in range(KH):
        cols = []
        for kw in range(KW):
            cols.append(
                x_pad[:, :, kh:kh + STRIDE * h_out:STRIDE,
                            kw:kw + STRIDE * w_out:STRIDE])
        rows.append(jnp.stack(cols, axis=2))        # (N, C_in, KW, Ho, Wo)
    patches = jnp.stack(rows, axis=2)               # (N, C_in, KH, KW, Ho, Wo)
    patches = patches.reshape(n, c_in * KH * KW, h_out * w_out)
    return patches.astype(dtype), h_out, w_out


def _make_kernel(n_hw_tiles, hw_tile, hw_real):
    """Kernel over grid (c_out-tile, batch, hw-tile)."""
    inv_hw = 1.0 / float(hw_real)
    unroll = True if n_hw_tiles <= 8 else 4

    def kernel(p_ref, w_ref, o_ref, sum_ref, sumsq_ref):
        # p_ref:     (1, K, hw_tile)     bf16 patches tile
        # w_ref:     (c_tile, K)         bf16 weight tile
        # o_ref:     (1, c_tile, hw_pad) output, resident across hw-tile axis
        # sum_ref:   (c_tile, 1)         f32 per-channel running sum
        # sumsq_ref: (c_tile, 1)         f32 per-channel running sum of squares
        y = jnp.dot(w_ref[...], p_ref[0],
                    preferred_element_type=jnp.float32)   # (c_tile, hw_tile)

        if n_hw_tiles == 1:
            # Whole spatial extent in one tile: fuse the norm directly.
            # Padded (zero) columns contribute exactly 0 to both sums, so
            # dividing by the real HW gives the correct mean / variance.
            s = jnp.sum(y, axis=-1, keepdims=True)
            ss = jnp.sum(y * y, axis=-1, keepdims=True)
            mean = s * inv_hw
            var = ss * inv_hw - mean * mean
            scale = jax.lax.rsqrt(jnp.maximum(var, 0.0) + EPS)
            yn = (y - mean) * scale
            o_ref[0] = jnp.where(yn >= 0, yn, NEG_SLOPE * yn).astype(o_ref.dtype)
            return

        j = pl.program_id(2)

        @pl.when(j == 0)
        def _():
            sum_ref[...] = jnp.zeros_like(sum_ref)
            sumsq_ref[...] = jnp.zeros_like(sumsq_ref)

        sum_ref[...] += jnp.sum(y, axis=-1, keepdims=True)
        sumsq_ref[...] += jnp.sum(y * y, axis=-1, keepdims=True)
        start = pl.multiple_of(j * hw_tile, hw_tile)
        o_ref[0, :, pl.ds(start, hw_tile)] = y.astype(o_ref.dtype)

        @pl.when(j == n_hw_tiles - 1)
        def _():
            # Finalize: single normalize + LeakyReLU pass over the resident
            # block (variance from the running sums — no extra var pass).
            mean = sum_ref[...] * inv_hw                  # (c_tile, 1)
            var = sumsq_ref[...] * inv_hw - mean * mean
            scale = jax.lax.rsqrt(jnp.maximum(var, 0.0) + EPS)

            def norm_body(i, carry):
                st = pl.multiple_of(i * hw_tile, hw_tile)
                yv = o_ref[0, :, pl.ds(st, hw_tile)].astype(jnp.float32)
                yn = (yv - mean) * scale
                o_ref[0, :, pl.ds(st, hw_tile)] = jnp.where(
                    yn >= 0, yn, NEG_SLOPE * yn).astype(o_ref.dtype)
                return carry

            jax.lax.fori_loop(0, n_hw_tiles, norm_body, 0, unroll=unroll)

    return kernel


@functools.partial(jax.jit,
                   static_argnames=("hw_tile", "c_tile", "compute_dtype",
                                    "out_dtype"))
def unet_down(x, weight, *, hw_tile=None, c_tile=None,
              compute_dtype=jnp.bfloat16, out_dtype=jnp.float32):
    """UNetDown forward (normalize=True, dropout=0.0).

    x:      (N, C_in, H, W)  float32, NCHW
    weight: (C_out, C_in, 4, 4) float32 (PyTorch conv layout, bias=False)
    returns (N, C_out, H//2, W//2) in `out_dtype`
    """
    n, c_in, h, w = x.shape
    c_out = weight.shape[0]
    k = c_in * KH * KW

    patches, h_out, w_out = _im2col(x, compute_dtype)     # (N, K, HW)
    hw = h_out * w_out
    hw_pad = _round_up(hw, _LANE)
    if hw_pad != hw:
        # Zero patches -> zero conv outputs -> running sums unaffected.
        patches = jnp.pad(patches, ((0, 0), (0, 0), (0, hw_pad - hw)))
    w_mat = weight.reshape(c_out, k).astype(compute_dtype)  # (C_out, K)

    vmem_limit = _vmem_limit_bytes()
    out_bytes = jnp.dtype(out_dtype).itemsize

    if c_tile is None:
        c_tile = _pick_c_tile(c_out, n)
    if hw_tile is None:
        hw_tile = _pick_hw_tile(hw_pad, k, c_tile, out_bytes, vmem_limit)
    assert hw_pad % hw_tile == 0 and c_out % c_tile == 0
    n_hw_tiles = hw_pad // hw_tile

    kernel = _make_kernel(n_hw_tiles, hw_tile, hw)

    out_flat = pl.pallas_call(
        kernel,
        out_shape=jax.ShapeDtypeStruct((n, c_out, hw_pad), out_dtype),
        grid_spec=pltpu.PrefetchScalarGridSpec(
            num_scalar_prefetch=0,
            # c_out tiles outermost: the weight tile's block index is constant
            # across both inner axes, so it is DMA'd once per c-tile instead
            # of N times.
            grid=(c_out // c_tile, n, n_hw_tiles),
            in_specs=[
                # patches: stream (K, hw_tile) tiles along the innermost axis
                pl.BlockSpec((1, k, hw_tile), lambda c, b, j: (b, 0, j)),
                # weight: block index depends only on the outermost axis
                pl.BlockSpec((c_tile, k), lambda c, b, j: (c, 0)),
            ],
            # output block index constant across j -> resident accumulator;
            # lane axis is HW_pad (multiple of 128 -> unmasked stores)
            out_specs=pl.BlockSpec((1, c_tile, hw_pad),
                                   lambda c, b, j: (b, c, 0)),
            scratch_shapes=[pltpu.VMEM((c_tile, 1), jnp.float32),
                            pltpu.VMEM((c_tile, 1), jnp.float32)],
        ),
        compiler_params=pltpu.CompilerParams(
            dimension_semantics=("parallel", "parallel", "arbitrary"),
            vmem_limit_bytes=vmem_limit,
        ),
    )(patches, w_mat)

    if hw_pad != hw:
        out_flat = out_flat[:, :, :hw]
    # (N, C_out, HW) -> (N, C_out, H_out, W_out): pure reshape, no transpose.
    return out_flat.reshape(n, c_out, h_out, w_out)


def _reference(x, weight, compute_dtype=jnp.bfloat16):
    """Pure-JAX reference with the same bf16-matmul / f32-norm recipe."""
    c_out = weight.shape[0]
    patches, h_out, w_out = _im2col(x, compute_dtype)
    w_mat = weight.reshape(c_out, -1).astype(compute_dtype)
    y = jnp.einsum("ck,nkp->ncp", w_mat, patches,
                   preferred_element_type=jnp.float32)
    mean = jnp.mean(y, axis=-1, keepdims=True)
    var = jnp.mean((y - mean) ** 2, axis=-1, keepdims=True)
    yn = (y - mean) * jax.lax.rsqrt(var + EPS)
    out = jnp.where(yn >= 0, yn, NEG_SLOPE * yn)
    return out.reshape(x.shape[0], c_out, h_out, w_out)


if __name__ == "__main__":
    key = jax.random.PRNGKey(0)
    kx1, kw1, kx2, kw2, kx3, kw3 = jax.random.split(key, 6)

    # Run 1: small default shapes (single HW tile per block -> fused path).
    N, C_IN, C_OUT, H, W = 2, 4, 8, 16, 16
    x = jax.random.normal(kx1, (N, C_IN, H, W), dtype=jnp.float32)
    weight = 0.1 * jax.random.normal(kw1, (C_OUT, C_IN, KH, KW),
                                     dtype=jnp.float32)
    out = unet_down(x, weight)
    jax.block_until_ready(out)
    assert out.shape == (N, C_OUT, H // 2, W // 2)
    ref = _reference(x, weight)
    assert jnp.allclose(out, ref, rtol=1e-2, atol=1e-2), \
        float(jnp.max(jnp.abs(out - ref)))

    # Run 2: force the streamed multi-tile path (hw tiled, 2 channel tiles).
    N2, C_IN2, C_OUT2, H2, W2 = 1, 4, 16, 32, 32
    x2 = jax.random.normal(kx2, (N2, C_IN2, H2, W2), dtype=jnp.float32)
    weight2 = 0.1 * jax.random.normal(kw2, (C_OUT2, C_IN2, KH, KW),
                                      dtype=jnp.float32)
    out2 = unet_down(x2, weight2, hw_tile=128, c_tile=8)
    jax.block_until_ready(out2)
    assert out2.shape == (N2, C_OUT2, H2 // 2, W2 // 2)
    ref2 = _reference(x2, weight2)
    assert jnp.allclose(out2, ref2, rtol=1e-2, atol=1e-2), \
        float(jnp.max(jnp.abs(out2 - ref2)))

    # Run 3: non-128-divisible spatial size exercises HW padding + slicing.
    N3, C_IN3, C_OUT3, H3, W3 = 1, 3, 8, 12, 12
    x3 = jax.random.normal(kx3, (N3, C_IN3, H3, W3), dtype=jnp.float32)
    weight3 = 0.1 * jax.random.normal(kw3, (C_OUT3, C_IN3, KH, KW),
                                      dtype=jnp.float32)
    out3 = unet_down(x3, weight3)
    jax.block_until_ready(out3)
    assert out3.shape == (N3, C_OUT3, H3 // 2, W3 // 2)
    ref3 = _reference(x3, weight3)
    assert jnp.allclose(out3, ref3, rtol=1e-2, atol=1e-2), \
        float(jnp.max(jnp.abs(out3 - ref3)))

    print("KERNEL_OK")
</pallas_src>

<mosaic_0001>
module attributes {stable_mosaic.version = 11 : i64} {
  func.func @kernel(%arg0: i32, %arg1: i32, %arg2: i32, %arg3: memref<1x64x128xbf16, #tpu.memory_space<vmem>>, %arg4: memref<8x64xbf16, #tpu.memory_space<vmem>>, %arg5: memref<1x8x128xf32, #tpu.memory_space<vmem>>, %arg6: memref<8x1xf32, #tpu.memory_space<vmem>>, %arg7: memref<8x1xf32, #tpu.memory_space<vmem>>) attributes {dimension_semantics = [#tpu.dimension_semantics<parallel>, #tpu.dimension_semantics<parallel>, #tpu.dimension_semantics<arbitrary>], iteration_bounds = array<i64: 1, 2, 1>, scalar_prefetch = 0 : i64, scratch_operands = 2 : i64, tpu.core_type = #tpu.core_type<tc>, window_params = [{transform_indices = @transform_0, window_bounds = array<i64: 1, 64, 128>}, {transform_indices = @transform_1, window_bounds = array<i64: 8, 64>}, {transform_indices = @transform_2, window_bounds = array<i64: 1, 8, 128>}]} {
    %c0 = arith.constant 0 : index
    %c0_0 = arith.constant 0 : index
    %0 = vector.load %arg4[%c0, %c0_0] : memref<8x64xbf16, #tpu.memory_space<vmem>>, vector<8x64xbf16>
    %c0_1 = arith.constant 0 : index
    %c0_2 = arith.constant 0 : index
    %c0_3 = arith.constant 0 : index
    %1 = vector.load %arg3[%c0_1, %c0_2, %c0_3] : memref<1x64x128xbf16, #tpu.memory_space<vmem>>, vector<1x64x128xbf16>
    %2 = vector.shape_cast %1 : vector<1x64x128xbf16> to vector<64x128xbf16>
    %cst = arith.constant dense<0.000000e+00> : vector<8x128xf32>
    %3 = tpu.matmul %0, %2, %cst {dimension_numbers = #tpu.dot_dimension_numbers<[1], [0], [0], [1], [0, 0, 1, 1], [], []>} : vector<8x64xbf16>, vector<64x128xbf16>, vector<8x128xf32> -> vector<8x128xf32>
    %cst_4 = arith.constant dense<0.000000e+00> : vector<8xf32>
    %4 = vector.multi_reduction <add>, %3, %cst_4 [1] : vector<8x128xf32> to vector<8xf32>
    %5 = vector.shape_cast %4 : vector<8xf32> to vector<8x1xf32>
    %6 = arith.mulf %3, %3 : vector<8x128xf32>
    %cst_5 = arith.constant dense<0.000000e+00> : vector<8xf32>
    %7 = vector.multi_reduction <add>, %6, %cst_5 [1] : vector<8x128xf32> to vector<8xf32>
    %8 = vector.shape_cast %7 : vector<8xf32> to vector<8x1xf32>
    %cst_6 = arith.constant 1.562500e-02 : f32
    %9 = vector.broadcast %cst_6 : f32 to vector<8x1xf32>
    %10 = arith.mulf %5, %9 : vector<8x1xf32>
    %cst_7 = arith.constant 1.562500e-02 : f32
    %11 = vector.broadcast %cst_7 : f32 to vector<8x1xf32>
    %12 = arith.mulf %8, %11 : vector<8x1xf32>
    %13 = arith.mulf %10, %10 : vector<8x1xf32>
    %14 = arith.subf %12, %13 : vector<8x1xf32>
    %cst_8 = arith.constant 0.000000e+00 : f32
    %15 = vector.broadcast %cst_8 : f32 to vector<8x1xf32>
    %16 = arith.maximumf %14, %15 : vector<8x1xf32>
    %cst_9 = arith.constant 9.99999974E-6 : f32
    %17 = vector.broadcast %cst_9 : f32 to vector<8x1xf32>
    %18 = arith.addf %16, %17 : vector<8x1xf32>
    %19 = math.rsqrt %18 : vector<8x1xf32>
    %20 = vector.broadcast %10 : vector<8x1xf32> to vector<8x128xf32>
    %21 = arith.subf %3, %20 : vector<8x128xf32>
    %22 = vector.broadcast %19 : vector<8x1xf32> to vector<8x128xf32>
    %23 = arith.mulf %21, %22 : vector<8x128xf32>
    %cst_10 = arith.constant 0.000000e+00 : f32
    %24 = vector.broadcast %cst_10 : f32 to vector<8x128xf32>
    %25 = arith.cmpf oge, %23, %24 : vector<8x128xf32>
    %cst_11 = arith.constant 2.000000e-01 : f32
    %26 = vector.broadcast %cst_11 : f32 to vector<8x128xf32>
    %27 = arith.mulf %26, %23 : vector<8x128xf32>
    %28 = arith.select %25, %23, %27 : vector<8x128xi1>, vector<8x128xf32>
    %c0_12 = arith.constant 0 : index
    %c0_13 = arith.constant 0 : index
    %c0_14 = arith.constant 0 : index
    %29 = vector.load %arg5[%c0_12, %c0_13, %c0_14] : memref<1x8x128xf32, #tpu.memory_space<vmem>>, vector<1x8x128xf32>
    %30 = vector.shape_cast %29 : vector<1x8x128xf32> to vector<8x128xf32>
    %31 = vector.shape_cast %28 : vector<8x128xf32> to vector<1x8x128xf32>
    tpu.vector_store %arg5[%c0_12, %c0_13, %c0_14], %31 {strides = array<i32>} : memref<1x8x128xf32, #tpu.memory_space<vmem>>, vector<1x8x128xf32>,
    return
  }
  func.func @transform_0(%arg0: i32, %arg1: i32, %arg2: i32) -> (i32, i32, i32) {
    %c0_i32 = arith.constant 0 : i32
    %c0_i32_0 = arith.constant 0 : i32
    return %arg1, %c0_i32, %arg2 : i32, i32, i32
  }
  func.func @transform_1(%arg0: i32, %arg1: i32, %arg2: i32) -> (i32, i32) {
    %c0_i32 = arith.constant 0 : i32
    %c0_i32_0 = arith.constant 0 : i32
    return %arg0, %c0_i32 : i32, i32
  }
  func.func @transform_2(%arg0: i32, %arg1: i32, %arg2: i32) -> (i32, i32, i32) {
    %c0_i32 = arith.constant 0 : i32
    %c0_i32_0 = arith.constant 0 : i32
    return %arg1, %arg0, %c0_i32 : i32, i32, i32
  }
}

</mosaic_0001>

<llo_original>
// kernel: unet_down.1
$region0: #{unet_down.1}
  #allocation0 [shape = 'u32[]', space=smem, size = 0x4, offset = 0x4, fixed_abs, tag = 'smem constant byte address 0x4 - core index']
  #allocation1 [shape = 'u32[144,128]{1,0:T(1,128)}', space=vmem, size = 0x12000, scoped, tag = 'internal scratch']
  #allocation2 [shape = 'f32[8,1]{1,0:T(8,128)}', space=vmem, size = 0x1000, scoped, tag = 'scratch operand']
  #allocation3 [shape = 'f32[8,1]{1,0:T(8,128)}', space=vmem, size = 0x1000, scoped, tag = 'scratch operand']
  %s0 = inlined_call_operand.vmem [shape: bf16[2,64,128], index: 0, kind: input, shape index: {}]
  %s1 = inlined_call_operand.vmem [shape: bf16[8,64], index: 1, kind: input, shape index: {}]
  %s2 = inlined_call_operand.vmem [shape: f32[2,8,128], index: 2, kind: output, shape index: {}]
  %s3 = sld [smem:[#allocation0]]
  $region41: #{unet_down.1} parent=0
    _
  %s5 = ssub.s32 1, %s3
  %s6 = scalar_select 0, %s5, %s3
  loop: start=0, step=1, limit=4
  $region2: #{unet_down.1} parent=0 // loop_pre_header
    _
  $region3: #{unet_down.1} parent=0 // loop_header
    %s8 = sphi 0, %s12
    %p9 = scmp.ge.s32.totalorder %s8, 4
    %s15 = sphi 0, %s34
    %s16 = sphi 0, %s30
    %s17 = sphi 0, %s26
    %s18 = sphi 0, %s15
    %s19 = sphi 0, %s16
    %s20 = sphi 0, %s17
    %s21 = sphi 0, %s18
    %s22 = sphi 0, %s19
    %s23 = sphi 0, %s20
    %s39 = sphi 0, %s41
    %s42 = sphi 0, %s39
    %s43 = sphi 0, %s42
    %s59 = sphi 0, %s43
    %s65 = sphi 0, %s67
    %s68 = sphi 0, %s65
    %s69 = sphi 0, %s68
    %s85 = sphi 0, %s69
    %s93 = sphi 0, %s95
    %s96 = sphi 0, %s93
    %s97 = sphi 0, %s96
    %s113 = sphi 0, %s97
  $region4: #{unet_down.1} parent=0 // loop_header_branch
    %11 = sbr.rel (%p9) target = $region8
  $region5: #{unet_down.1} parent=0 // loop_body
    %s13 = ssub.s32 %s8, 1
    %s14 = ssub.s32 %s8, 2
    %s24 = sadd.s32 1, %s17
    %p25 = scmp.ge.s32.totalorder %s24, 1
    %s26 = scalar_select %p25, 0, %s24
    %s27 = sadd.s32 1, %s16
    %s28 = scalar_select %p25, %s27, %s16
    %p29 = scmp.ge.s32.totalorder %s28, 2
    %s30 = scalar_select %p29, 0, %s28
    %s31 = sadd.s32 1, %s15
    %s32 = scalar_select %p29, %s31, %s15
    %p33 = scmp.ge.s32.totalorder %s32, 1
    %s34 = scalar_select %p33, 0, %s32
    %s35 = ssub.s32 %s16, %s30
    %s36 = ssub.s32 %s17, %s26
    %s37 = sor.u32 %s35, %s36
    %p38 = scmp.eq.s32.totalorder %s37, 0
    %s40 = sadd.s32 %s39, 1
    %s41 = scalar_select %p38, %s39, %s40
    %p44 = pneg %p38
    %p45 = scmp.eq.s32.totalorder %s8, 1
    %p46 = por %p44, %p45
    %p47 = scmp.ne.s32.totalorder %s39, %s42
    %p48 = scmp.eq.s32.totalorder %s8, 0
    %p49 = por %p47, %p48
    %p50 = scmp.ne.s32.totalorder %s39, %s42
    %p51 = scmp.eq.s32.totalorder %s13, 1
    %p52 = por %p50, %p51
    %p53 = scmp.ne.s32.totalorder %s42, %s43
    %p54 = scmp.eq.s32.totalorder %s13, 0
    %p55 = por %p53, %p54
    %p56 = scmp.ne.s32.totalorder %s42, %s43
    %p57 = scmp.eq.s32.totalorder %s14, 1
    %p58 = por %p56, %p57
    %p60 = scmp.ne.s32.totalorder %s43, %s59
    %p61 = scmp.eq.s32.totalorder %s14, 0
    %p62 = por %p60, %p61
    %s63 = ssub.s32 %s15, %s34
    %p64 = scmp.eq.s32.totalorder %s63, 0
    %s66 = sadd.s32 %s65, 1
    %s67 = scalar_select %p64, %s65, %s66
    %p70 = pneg %p64
    %p71 = scmp.eq.s32.totalorder %s8, 1
    %p72 = por %p70, %p71
    %p73 = scmp.ne.s32.totalorder %s65, %s68
    %p74 = scmp.eq.s32.totalorder %s8, 0
    %p75 = por %p73, %p74
    %p76 = scmp.ne.s32.totalorder %s65, %s68
    %p77 = scmp.eq.s32.totalorder %s13, 1
    %p78 = por %p76, %p77
    %p79 = scmp.ne.s32.totalorder %s68, %s69
    %p80 = scmp.eq.s32.totalorder %s13, 0
    %p81 = por %p79, %p80
    %p82 = scmp.ne.s32.totalorder %s68, %s69
    %p83 = scmp.eq.s32.totalorder %s14, 1
    %p84 = por %p82, %p83
    %p86 = scmp.ne.s32.totalorder %s69, %s85
    %p87 = scmp.eq.s32.totalorder %s14, 0
    %p88 = por %p86, %p87
    %s89 = ssub.s32 %s16, %s30
    %s90 = ssub.s32 %s15, %s34
    %s91 = sor.u32 %s89, %s90
    %p92 = scmp.eq.s32.totalorder %s91, 0
    %s94 = sadd.s32 %s93, 1
    %s95 = scalar_select %p92, %s93, %s94
    %p98 = pneg %p92
    %p99 = scmp.eq.s32.totalorder %s8, 1
    %p100 = por %p98, %p99
    %p101 = scmp.ne.s32.totalorder %s93, %s96
    %p102 = scmp.eq.s32.totalorder %s8, 0
    %p103 = por %p101, %p102
    %p104 = scmp.ne.s32.totalorder %s93, %s96
    %p105 = scmp.eq.s32.totalorder %s13, 1
    %p106 = por %p104, %p105
    %p107 = scmp.ne.s32.totalorder %s96, %s97
    %p108 = scmp.eq.s32.totalorder %s13, 0
    %p109 = por %p107, %p108
    %p110 = scmp.ne.s32.totalorder %s96, %s97
    %p111 = scmp.eq.s32.totalorder %s14, 1
    %p112 = por %p110, %p111
    %p114 = scmp.ne.s32.totalorder %s97, %s113
    %p115 = scmp.eq.s32.totalorder %s14, 0
    %p116 = por %p114, %p115
    %p117 = scmp.le.s32.totalorder 1, %s8
    %p118 = scmp.lt.s32.totalorder %s8, 3
    %p119 = pnand %p117, %p118
    %p120 = pneg %p119
    // Predicated region
    $region9: #{unet_down.1} parent=5 // pred_check
      _
    $region10: #{unet_down.1} parent=5 // pred_check_branch
      %122 = sbr.rel (%p119) target = $region12
    $region11: #{unet_down.1} parent=5 // pred_region
      %s123 = ssub.s32 %s8, 1
      // Predicated region
      $region13: #{unet_down.1} parent=11 // pred_check
        %p124 = pneg %p81
      $region14: #{unet_down.1} parent=11 // pred_check_branch
        %126 = sbr.rel (%p124) target = $region16
      $region15: #{unet_down.1} parent=11 // pred_region
        %p127 = scmp.lt.s32.totalorder %s18, 0
        %s128 = scalar_select %p127, %s18, 0
        %s129 = smul.addr %s128, 4
        %s130 = scalar_lea.vmem %s1, %s129
      $region16: #{unet_down.1} parent=11 // pred_fallthru
        _
    $region12: #{unet_down.1} parent=5 // pred_fallthru
      _
    %p131 = scmp.lt.s32.totalorder %s8, 2
    // Predicated region
    $region17: #{unet_down.1} parent=5 // pred_check
      %p132 = pneg %p131
    $region18: #{unet_down.1} parent=5 // pred_check_branch
      %134 = sbr.rel (%p132) target = $region20
    $region19: #{unet_down.1} parent=5 // pred_region
      // Predicated region
      $region21: #{unet_down.1} parent=19 // pred_check
        %p135 = pneg %p49
      $region22: #{unet_down.1} parent=19 // pred_check_branch
        %137 = sbr.rel (%p135) target = $region24
      $region23: #{unet_down.1} parent=19 // pred_region
        %p138 = scmp.lt.s32.totalorder %s16, 1
        %s139 = scalar_select %p138, %s16, 1
        %p140 = scmp.lt.s32.totalorder %s17, 0
        %s141 = scalar_select %p140, %s17, 0
        %s142 = smul.addr %s139, 8
        %s143 = sadd.s32 %s141, %s142
        %s144 = smul.addr %s143, 4
        %s145 = scalar_lea.vmem %s0, %s144
      $region24: #{unet_down.1} parent=19 // pred_fallthru
        _
    $region20: #{unet_down.1} parent=5 // pred_fallthru
      _
    %p146 = scmp.le.s32.totalorder 1, %s8
    %p147 = scmp.lt.s32.totalorder %s8, 3
    %p148 = pnand %p146, %p147
    %p149 = pneg %p148
    // Predicated region
    $region25: #{unet_down.1} parent=5 // pred_check
      _
    $region26: #{unet_down.1} parent=5 // pred_check_branch
      %151 = sbr.rel (%p148) target = $region28
    $region27: #{unet_down.1} parent=5 // pred_region
      %s152 = ssub.s32 %s8, 1
      %p153 = scmp.lt.s32.totalorder %s19, 1
      %s154 = scalar_select %p153, %s19, 1
      %p155 = scmp.lt.s32.totalorder %s20, 0
      %s156 = scalar_select %p155, %s20, 0
      %s157 = smul.addr %s154, 8
      %s158 = sadd.s32 %s156, %s157
      %s159 = smul.addr %s158, 4
      %s160 = scalar_lea.vmem %s0, %s159
      %p161 = pneg %p55
      %p162 = pneg %p52
      %p163 = scmp.lt.s32.totalorder %s18, 0
      %s164 = scalar_select %p163, %s18, 0
      %s165 = smul.addr %s164, 4
      %s166 = scalar_lea.vmem %s1, %s165
      %p167 = pneg %p81
      %p168 = pneg %p78
      %p169 = pneg %p109
      %p170 = pneg %p106
      %p171 = scmp.lt.s32.totalorder %s19, 1
      %s172 = scalar_select %p171, %s19, 1
      %p173 = scmp.lt.s32.totalorder %s18, 0
      %s174 = scalar_select %p173, %s18, 0
      %s175 = sadd.s32 %s174, %s172
      %s176 = smul.addr %s175, 8
      %s177 = scalar_lea.vmem %s2, %s176
      %p178 = scmp.lt.s32.totalorder %s19, 1
      %s179 = scalar_select %p178, %s19, 1
      %p180 = scmp.lt.s32.totalorder %s20, 0
      %s181 = scalar_select %p180, %s20, 0
      %s182 = smul.addr %s179, 8
      %s183 = sadd.s32 %s181, %s182
      %s184 = smul.addr %s183, 4
      %s185 = scalar_lea.vmem %s0, %s184
      %p186 = scmp.lt.s32.totalorder %s18, 0
      %s187 = scalar_select %p186, %s18, 0
      %s188 = smul.addr %s187, 4
      %s189 = scalar_lea.vmem %s1, %s188
      %p190 = scmp.lt.s32.totalorder %s19, 1
      %s191 = scalar_select %p190, %s19, 1
      %p192 = scmp.lt.s32.totalorder %s18, 0
      %s193 = scalar_select %p192, %s18, 0
      %s194 = sadd.s32 %s193, %s191
      %s195 = smul.addr %s194, 8
      %s196 = scalar_lea.vmem %s2, %s195
      %v198 = vld [vmem:[%s189] sm:$0xf]
      %v199 = vld [vmem:[%s185] sm:$0xf]
      %v200 = vld [vmem:[%s185 + $0x4] sm:$0xf]
      %v201 = vld [vmem:[%s185 + $0x8] sm:$0xf]
      %v202 = vld [vmem:[%s185 + $0xc] sm:$0xf]
      %v203 = vld [vmem:[%s185 + $0x10] sm:$0xf]
      %v204 = vld [vmem:[%s185 + $0x14] sm:$0xf]
      %v205 = vld [vmem:[%s185 + $0x18] sm:$0xf]
      %v206 = vld [vmem:[%s185 + $0x1c] sm:$0xf]
      %v215 = vunpack.c.l.b16 %v199
      %v216 = vunpack.c.l.b16 %v200
      %v217 = vunpack.c.l.b16 %v201
      %v218 = vunpack.c.l.b16 %v202
      %v219 = vunpack.c.l.b16 %v203
      %v220 = vunpack.c.l.b16 %v204
      %v221 = vunpack.c.l.b16 %v205
      %v222 = vunpack.c.l.b16 %v206
      %v223 = vpack.c.b16 %v216, %v215
      %v224 = vpack.c.b16 %v218, %v217
      %v225 = vpack.c.b16 %v220, %v219
      %v226 = vpack.c.b16 %v222, %v221
      %vm231 = vcmask 523264
      %v233 = vsel %vm231, %v198, 0
      %235 = vmatprep.subr.bf16.mxu0 0
      %236 = vmatpush1.bf16.msra.mxu0 %v223
      %237 = vmatprep.subr.bf16.mxu0 0
      %238 = vmatpush1.bf16.msra.mxu0 %v224
      %239 = vmatprep.subr.bf16.mxu0 0
      %240 = vmatpush1.bf16.msra.mxu0 %v225
      %241 = vmatprep.subr.bf16.mxu0 0
      %242 = vmatpush1.bf16.msra.mxu0 %v226
      %243 = vmatprep.subr.bf16.mxu0 0
      %244 = vmatpush1.bf16.msra.mxu0 0
      %245 = vmatprep.subr.bf16.mxu0 0
      %246 = vmatpush1.bf16.msra.mxu0 0
      %247 = vmatprep.subr.bf16.mxu0 0
      %248 = vmatpush1.bf16.msra.mxu0 0
      %249 = vmatprep.subr.bf16.mxu0 0
      %250 = vmatpush1.bf16.msra.mxu0 0
      %251 = vmatprep.subr.bf16.mxu0 0
      %252 = vmatpush1.bf16.msra.mxu0 0
      %253 = vmatprep.subr.bf16.mxu0 0
      %254 = vmatpush1.bf16.msra.mxu0 0
      %255 = vmatprep.subr.bf16.mxu0 0
      %256 = vmatpush1.bf16.msra.mxu0 0
      %257 = vmatprep.subr.bf16.mxu0 0
      %258 = vmatpush1.bf16.msra.mxu0 0
      %259 = vmatprep.subr.bf16.mxu0 0
      %260 = vmatpush1.bf16.msra.mxu0 0
      %261 = vmatprep.subr.bf16.mxu0 0
      %262 = vmatpush1.bf16.msra.mxu0 0
      %263 = vmatprep.subr.bf16.mxu0 0
      %264 = vmatpush1.bf16.msra.mxu0 0
      %265 = vmatprep.subr.bf16.mxu0 0
      %266 = vmatpush1.bf16.msra.mxu0 0
      %267 = vmatprep.mubr.bf16.mxu0 0
      %268 = vmatmul.mubr.bf16.gmra.mrb[0].mxu0 %v233
      %v269 = vpop.f32.mrb[0].mxu0
      %v270 = vadd.f32 0.0, %v269
      %v271 = vpop.f32.mrb[0].mxu0
      %v272 = vpop.f32.mrb[0].mxu0
      %v273 = vpop.f32.mrb[0].mxu0
      %274 = vdwg.mxu0
      %275 = vadd.xlane.f32.xlu0 %v270
      %v276 = vpop.xlane.xlu0 %275
      %v277 = vmul.f32 %v270, %v270
      %278 = vadd.xlane.f32.xlu0 %v277
      %v279 = vpop.xlane.xlu0 %278
      %v280 = vmul.f32 %v276, 0.015625
      %v281 = vmul.f32 %v279, 0.015625
      %v282 = vmul.f32 %v280, %v280
      %v283 = vsub.f32 %v281, %v282
      %v284 = vmax.f32 %v283, 0.0
      %v285 = vadd.f32 %v284, 1e-05
      %v286 = vrsqrt.pop %v285
      %v287 = vsub.f32 %v270, %v280
      %v288 = vmul.f32 %v287, %v286
      %vm289 = vcmp.ge.f32.partialorder %v288, 0.0
      %v290 = vmul.f32 %v288, 0.2
      %v291 = vsel %vm289, %v288, %v290
      %292 = vst [vmem:[%s196] sm:$0xff] %v291
      %p293 = scmp.lt.s32.totalorder %s19, 1
      %s294 = scalar_select %p293, %s19, 1
      %p295 = scmp.lt.s32.totalorder %s18, 0
      %s296 = scalar_select %p295, %s18, 0
      %s297 = sadd.s32 %s296, %s294
      %s298 = smul.addr %s297, 8
      %s299 = scalar_lea.vmem %s2, %s298
      // Predicated region
      $region29: #{unet_down.1} parent=27 // pred_check
        %p300 = pneg %p106
      $region30: #{unet_down.1} parent=27 // pred_check_branch
        %302 = sbr.rel (%p300) target = $region32
      $region31: #{unet_down.1} parent=27 // pred_region
        _
      $region32: #{unet_down.1} parent=27 // pred_fallthru
        _
    $region28: #{unet_down.1} parent=5 // pred_fallthru
      _
    %p303 = scmp.le.s32.totalorder 2, %s8
    // Predicated region
    $region33: #{unet_down.1} parent=5 // pred_check
      %p304 = pneg %p303
    $region34: #{unet_down.1} parent=5 // pred_check_branch
      %306 = sbr.rel (%p304) target = $region36
    $region35: #{unet_down.1} parent=5 // pred_region
      %s307 = ssub.s32 %s8, 2
      // Predicated region
      $region37: #{unet_down.1} parent=35 // pred_check
        %p308 = pneg %p112
      $region38: #{unet_down.1} parent=35 // pred_check_branch
        %310 = sbr.rel (%p308) target = $region40
      $region39: #{unet_down.1} parent=35 // pred_region
        %p311 = scmp.lt.s32.totalorder %s22, 1
        %s312 = scalar_select %p311, %s22, 1
        %p313 = scmp.lt.s32.totalorder %s21, 0
        %s314 = scalar_select %p313, %s21, 0
        %s315 = sadd.s32 %s314, %s312
        %s316 = smul.addr %s315, 8
        %s317 = scalar_lea.vmem %s2, %s316
      $region40: #{unet_down.1} parent=35 // pred_fallthru
        _
    $region36: #{unet_down.1} parent=5 // pred_fallthru
      _
  $region6: #{unet_down.1} parent=0 // loop_footer
    %s12 = sadd.s32 1, %s8
  $region7: #{unet_down.1} parent=0 // loop_footer_branch
    %7 = sbr.rel target = $region3
  $region8: #{unet_down.1} parent=0 // loop_exit
    _

</llo_original>
